<compile_context>
chip_gen: v7x
topology: tpu7x:2x2x1
jax: 0.10.0
libtpu: 0.0.40
codegen_flags: <defaults>
</compile_context>

<pallas_src>
import functools

import numpy as np

import jax
import jax.numpy as jnp
from jax import lax
from jax.experimental import pallas as pl
from jax.experimental.pallas import tpu as pltpu

_LANE = 128
_TILE_BYTES = 2 * 1024 * 1024     # per-input block; 2 inputs x 2 buffers = 8 MiB
_MIN_GRID_TILES = 2               # keep the parallel axis shardable on v7x
_PALLAS_MIN_ELEMS = 1024          # below one packed group, use plain XLA


def _sublanes_for(itemsize: int) -> int:
    # Sub-32-bit dtypes pack along sublanes: one vreg holds (8,128) f32,
    # (16,128) bf16, (32,128) int8/fp8.
    return max(8, 32 // max(1, itemsize))


@functools.lru_cache(maxsize=1)
def _vmem_limit_bytes() -> int:
    # Generation-aware scoped-VMEM limit: half of physical, capped at 64 MiB.
    # v5e/v6e (128 MiB physical) -> 64 MiB; v7x (64 MiB physical) -> 32 MiB.
    try:
        cap = int(pltpu.get_tpu_info().vmem_capacity_bytes)
        return int(min(64 * 1024 * 1024, cap // 2))
    except Exception:
        return 32 * 1024 * 1024


def _sq_diff_partial_kernel(a_ref, b_ref, out_ref, *, groups_per_tile,
                            groups_total, ragged):
    """One grid step: out <- sum over this tile's groups of (a - b)**2.

    a_ref, b_ref: (groups_per_tile, sublane, 128) VMEM blocks (native dtype,
                  widened to f32 on the VPU here).
    out_ref:      (sublane, 128) float32 partial-sum slab for this tile.

    The leading-axis reduction lowers to elementwise vreg adds (VPU only);
    no per-step cross-lane reduce, no scalar dependence chain.  When the
    group count does not divide the tile size (static `ragged`), groups of
    the last tile that fall past `groups_total` contain unspecified data and
    are zeroed with a select before the reduction.
    """
    d = a_ref[...].astype(jnp.float32) - b_ref[...].astype(jnp.float32)
    sq = d * d
    if ragged:
        gid = (pl.program_id(0) * groups_per_tile
               + lax.broadcasted_iota(jnp.int32, sq.shape, 0))
        sq = jnp.where(gid < groups_total, sq, 0.0)
    out_ref[...] = jnp.sum(sq, axis=0)


def _pallas_sum_sq_diff(a: jax.Array, b: jax.Array) -> jax.Array:
    """sum((a - b)**2) over two equal-shaped arrays via a Pallas TPU kernel."""
    assert a.shape == b.shape
    n = int(np.prod(a.shape))

    itemsize_a = jnp.dtype(a.dtype).itemsize
    itemsize_b = jnp.dtype(b.dtype).itemsize
    sub = _sublanes_for(min(itemsize_a, itemsize_b))
    group = sub * _LANE

    a_flat = a.reshape(-1)
    b_flat = b.reshape(-1)

    groups_total = -(-n // group)                       # ceil div
    # Only pad up to the next packed group (<= group-1 elements, ~4 KiB max);
    # the padded diff is 0 so the sum is unchanged.  In the common case
    # (group-multiple sizes) this is a free metadata-only reshape.
    padded_n = groups_total * group
    if padded_n != n:
        a_flat = jnp.pad(a_flat, (0, padded_n - n))
        b_flat = jnp.pad(b_flat, (0, padded_n - n))

    a3 = a_flat.reshape(groups_total, sub, _LANE)
    b3 = b_flat.reshape(groups_total, sub, _LANE)

    # Tile sizing: ~_TILE_BYTES per input block, but keep >= _MIN_GRID_TILES
    # tiles whenever possible so the "parallel" axis can use both v7x cores.
    max_itemsize = max(itemsize_a, itemsize_b)
    gpt_cap = max(1, _TILE_BYTES // (group * max_itemsize))
    want_tiles = max(_MIN_GRID_TILES, -(-groups_total // gpt_cap))
    groups_per_tile = max(1, -(-groups_total // want_tiles))
    n_tiles = -(-groups_total // groups_per_tile)
    ragged = (groups_total % groups_per_tile) != 0

    kernel = functools.partial(
        _sq_diff_partial_kernel,
        groups_per_tile=groups_per_tile,
        groups_total=groups_total,
        ragged=ragged,
    )

    partials = pl.pallas_call(
        kernel,
        out_shape=jax.ShapeDtypeStruct((n_tiles * sub, _LANE), jnp.float32),
        grid_spec=pl.GridSpec(
            grid=(n_tiles,),
            in_specs=[
                pl.BlockSpec((groups_per_tile, sub, _LANE),
                             lambda i: (i, 0, 0)),
                pl.BlockSpec((groups_per_tile, sub, _LANE),
                             lambda i: (i, 0, 0)),
            ],
            out_specs=pl.BlockSpec((sub, _LANE), lambda i: (i, 0)),
        ),
        compiler_params=pltpu.CompilerParams(
            dimension_semantics=("parallel",),      # independent partial sums
            vmem_limit_bytes=_vmem_limit_bytes(),   # generation-aware
        ),
    )(a3, b3)

    # Tiny epilogue: reduce the (n_tiles*sub, 128) partial-sum slab.
    return jnp.sum(partials)


def pallas_mse(a: jax.Array, b: jax.Array) -> jax.Array:
    """mean((a - b)**2) with the heavy reduction done in Pallas."""
    n = int(np.prod(a.shape))
    if n < _PALLAS_MIN_ELEMS:
        # Latency-bound tiny inputs: one fused XLA op beats a kernel launch.
        return jnp.mean((a.astype(jnp.float32) - b.astype(jnp.float32)) ** 2)
    return _pallas_sum_sq_diff(a, b) * jnp.float32(1.0 / n)


class GrayLevelLoss:
    """JAX/Pallas port of the PyTorch GrayLevelLoss module."""

    def __init__(self, img_chw: jax.Array, resize: int):
        C = img_chw.shape[0]
        self.resize = resize
        # Init-time antialiased resize of the reference image (glue, not hot).
        self.img = jax.image.resize(img_chw, (C, resize, resize), method="bilinear")
        self.name = f"GrayLevelLoss({resize})"
        self._resize_cache = {}

    def _img_at(self, H: int, W: int) -> jax.Array:
        # self.img is a concrete constant created at __init__, so this resize
        # is shape-only work: compute it once per (H, W) and reuse across calls
        # instead of re-streaming a full-size image through HBM every forward.
        key = (int(H), int(W))
        cached = self._resize_cache.get(key)
        if cached is None:
            C = self.img.shape[0]
            cached = jax.image.resize(self.img, (C, H, W), method="bilinear")
            self._resize_cache[key] = cached
        return cached

    def __call__(self, x: jax.Array, y: jax.Array = None, mask: jax.Array = None) -> jax.Array:
        if self.img is None:
            raise ValueError("Uninitialized with image")
        H, W = x.shape[-2], x.shape[-1]
        img = self._img_at(H, W)
        # Hot path in Pallas; native dtypes go straight into the kernel.
        return pallas_mse(img, x[0])


class L2Loss:
    """Plain MSE(x, y) loss sharing the same Pallas reduction kernel."""

    name = "L2Loss"

    def __call__(self, x: jax.Array, y: jax.Array, mask: jax.Array = None) -> jax.Array:
        return pallas_mse(x, y)


class LossesList:
    """JAX port of the PyTorch LossesList module: weighted sum of losses."""

    def __init__(self, losses, weights, name=None):
        self.weights = list(weights)
        self.losses = list(losses)
        self.name = name if name else "+".join(
            f"{w}*{l.name}" for l, w in zip(self.losses, self.weights)
        )

    def __call__(self, x, y, mask):
        # Weighted sum of a handful of scalars — glue, no kernel needed.
        return sum(
            self.losses[i](x, y, mask) * self.weights[i]
            for i in range(len(self.losses))
        )


if __name__ == "__main__":
    key = jax.random.PRNGKey(0)
    k1, k2, k3, k4, k5, k6, k7 = jax.random.split(key, 7)

    # Reference image: CHW; inputs x, y: NCHW; mask: N1HW (unused by these losses).
    ref_img = jax.random.uniform(k1, (4, 20, 20), dtype=jnp.float32)
    x = jax.random.normal(k2, (2, 4, 16, 16), dtype=jnp.float32)
    y = jax.random.normal(k3, (2, 4, 16, 16), dtype=jnp.float32)
    mask = jnp.ones((2, 1, 16, 16), dtype=jnp.float32)

    gray = GrayLevelLoss(ref_img, resize=8)
    l2 = L2Loss()
    loss_list = LossesList([gray, l2], [0.5, 2.0])

    total = loss_list(x, y, mask)
    total = jax.block_until_ready(total)

    # Silent correctness check against a pure-JAX reference.
    img_resized = jax.image.resize(gray.img, (4, 16, 16), method="bilinear")
    ref_gray = jnp.mean((img_resized - x[0]) ** 2)
    ref_l2 = jnp.mean((x - y) ** 2)
    ref_total = 0.5 * ref_gray + 2.0 * ref_l2
    np.testing.assert_allclose(
        np.asarray(total), np.asarray(ref_total), rtol=1e-5, atol=1e-5
    )

    # Extra silent check: ragged multi-tile path (5 groups -> 2 tiles of 3,
    # last tile masked in-kernel; no wrapper pad since 5120 % 1024 == 0).
    a_r = jax.random.normal(k4, (5, 32, 32), dtype=jnp.float32)
    b_r = jax.random.normal(k5, (5, 32, 32), dtype=jnp.float32)
    got_r = jax.block_until_ready(pallas_mse(a_r, b_r))
    np.testing.assert_allclose(
        np.asarray(got_r), np.asarray(jnp.mean((a_r - b_r) ** 2)),
        rtol=1e-5, atol=1e-5,
    )

    # Extra silent check: bf16 (16-sublane packing) + small group pad path.
    a_h = jax.random.normal(k6, (7, 13, 17), dtype=jnp.float32).astype(jnp.bfloat16)
    b_h = jax.random.normal(k7, (7, 13, 17), dtype=jnp.float32).astype(jnp.bfloat16)
    got_h = jax.block_until_ready(pallas_mse(a_h, b_h))
    ref_h = jnp.mean(
        (a_h.astype(jnp.float32) - b_h.astype(jnp.float32)) ** 2
    )
    np.testing.assert_allclose(
        np.asarray(got_h), np.asarray(ref_h), rtol=1e-4, atol=1e-5
    )

    print("KERNEL_OK")
</pallas_src>

<mosaic_0001>
module attributes {stable_mosaic.version = 11 : i64} {
  func.func @_sq_diff_partial_kernel(%arg0: i32, %arg1: memref<1x8x128xf32, #tpu.memory_space<vmem>>, %arg2: memref<1x8x128xf32, #tpu.memory_space<vmem>>, %arg3: memref<8x128xf32, #tpu.memory_space<vmem>>) attributes {dimension_semantics = [#tpu.dimension_semantics<parallel>], iteration_bounds = array<i64: 1>, scalar_prefetch = 0 : i64, scratch_operands = 0 : i64, tpu.core_type = #tpu.core_type<tc>, window_params = [{transform_indices = @transform_0, window_bounds = array<i64: 1, 8, 128>}, {transform_indices = @transform_1, window_bounds = array<i64: 1, 8, 128>}, {transform_indices = @transform_2, window_bounds = array<i64: 8, 128>}]} {
    %c0 = arith.constant 0 : index
    %c0_0 = arith.constant 0 : index
    %c0_1 = arith.constant 0 : index
    %0 = vector.load %arg1[%c0, %c0_0, %c0_1] : memref<1x8x128xf32, #tpu.memory_space<vmem>>, vector<1x8x128xf32>
    %c0_2 = arith.constant 0 : index
    %c0_3 = arith.constant 0 : index
    %c0_4 = arith.constant 0 : index
    %1 = vector.load %arg2[%c0_2, %c0_3, %c0_4] : memref<1x8x128xf32, #tpu.memory_space<vmem>>, vector<1x8x128xf32>
    %2 = arith.subf %0, %1 : vector<1x8x128xf32>
    %3 = arith.mulf %2, %2 : vector<1x8x128xf32>
    %cst = arith.constant dense<0.000000e+00> : vector<8x128xf32>
    %4 = vector.multi_reduction <add>, %3, %cst [0] : vector<1x8x128xf32> to vector<8x128xf32>
    %c0_5 = arith.constant 0 : index
    %c0_6 = arith.constant 0 : index
    %5 = vector.load %arg3[%c0_5, %c0_6] : memref<8x128xf32, #tpu.memory_space<vmem>>, vector<8x128xf32>
    tpu.vector_store %arg3[%c0_5, %c0_6], %4 {strides = array<i32>} : memref<8x128xf32, #tpu.memory_space<vmem>>, vector<8x128xf32>,
    return
  }
  func.func @transform_0(%arg0: i32) -> (i32, i32, i32) {
    %c0_i32 = arith.constant 0 : i32
    %c0_i32_0 = arith.constant 0 : i32
    %c0_i32_1 = arith.constant 0 : i32
    return %arg0, %c0_i32, %c0_i32_0 : i32, i32, i32
  }
  func.func @transform_1(%arg0: i32) -> (i32, i32, i32) {
    %c0_i32 = arith.constant 0 : i32
    %c0_i32_0 = arith.constant 0 : i32
    %c0_i32_1 = arith.constant 0 : i32
    return %arg0, %c0_i32, %c0_i32_0 : i32, i32, i32
  }
  func.func @transform_2(%arg0: i32) -> (i32, i32) {
    %c0_i32 = arith.constant 0 : i32
    %c0_i32_0 = arith.constant 0 : i32
    return %arg0, %c0_i32 : i32, i32
  }
}

</mosaic_0001>

<llo_original>
// kernel: tpu_custom_call.1
$region0: #{tpu_custom_call.1}
  #allocation0 [shape = 'u32[]', space=smem, size = 0x4, offset = 0x4, fixed_abs, tag = 'smem constant byte address 0x4 - core index']
  #allocation1 [shape = 'u32[144,128]{1,0:T(1,128)}', space=vmem, size = 0x12000, scoped, tag = 'internal scratch']
  %s0 = inlined_call_operand.hbm [shape: f32[1,8,128], index: 0, kind: input, shape index: {}]
  %s1 = inlined_call_operand.hbm [shape: f32[1,8,128], index: 1, kind: input, shape index: {}]
  %s2 = inlined_call_operand.hbm [shape: f32[8,128], index: 2, kind: output, shape index: {}]
  %s3 = sld [smem:[#allocation0]]
  $region26: #{tpu_custom_call.1} parent=0
    _
  %s5 = ssub.s32 1, %s3
  %s6 = scalar_select 0, %s5, %s3
  $region1: #{tpu_custom_call.1} parent=0
    #allocation2 [shape = 'u8[4096]{0}', space=vmem, size = 0x1000, scoped, tag = 'input window, operand 0, single buffered']
    #allocation3 [shape = 's32[1]{0}', space=sflag, size = 0x4, scoped, tag = 'scoped memory for tpu_custom_call.1']
    #allocation4 [shape = 's32[1]{0}', space=sflag, size = 0x4, scoped, tag = 'scoped memory for tpu_custom_call.1']
    #allocation5 [shape = 'u8[4096]{0}', space=vmem, size = 0x1000, scoped, tag = 'input window, operand 1, single buffered']
    #allocation6 [shape = 's32[1]{0}', space=sflag, size = 0x4, scoped, tag = 'scoped memory for tpu_custom_call.1']
    #allocation7 [shape = 'u8[4096]{0}', space=vmem, size = 0x1000, scoped, tag = 'output window, operand 0, single buffered']
    %7 = vsyncpa [#allocation3], 0
    %8 = vsyncpa [#allocation6], 0
    %9 = vsyncpa [#allocation4], 0
    // Predicated region
    $region2: #{tpu_custom_call.1} parent=1 // pred_check
      _
    $region3: #{tpu_custom_call.1} parent=1 // pred_check_branch
      %11 = sbr.rel (0) target = $region5
    $region4: #{tpu_custom_call.1} parent=1 // pred_region
      %s13 = ssub.s32 128, 128
      %14 = vsyncadd [#allocation3], %s13
      %s16 = sshll.u32 [#allocation2], 4
      %s17 = int_to_ptr.vmem [resolvable:$true] %s16
      %19 = dma.hbm_to_vmem [thread:$0]  %s0, 128, %s17, [#allocation3]
    $region5: #{tpu_custom_call.1} parent=1 // pred_fallthru
      _
    // Predicated region
    $region6: #{tpu_custom_call.1} parent=1 // pred_check
      _
    $region7: #{tpu_custom_call.1} parent=1 // pred_check_branch
      %21 = sbr.rel (0) target = $region9
    $region8: #{tpu_custom_call.1} parent=1 // pred_region
      %s23 = ssub.s32 128, 128
      %24 = vsyncadd [#allocation6], %s23
      %s26 = sshll.u32 [#allocation5], 4
      %s27 = int_to_ptr.vmem [resolvable:$true] %s26
      %29 = dma.hbm_to_vmem [thread:$0]  %s1, 128, %s27, [#allocation6]
    $region9: #{tpu_custom_call.1} parent=1 // pred_fallthru
      _
    // Predicated region
    $region10: #{tpu_custom_call.1} parent=1 // pred_check
      _
    $region11: #{tpu_custom_call.1} parent=1 // pred_check_branch
      %31 = sbr.rel (0) target = $region13
    $region12: #{tpu_custom_call.1} parent=1 // pred_region
      %32 = dma.done [#allocation3], 128
    $region13: #{tpu_custom_call.1} parent=1 // pred_fallthru
      _
    // Predicated region
    $region14: #{tpu_custom_call.1} parent=1 // pred_check
      _
    $region15: #{tpu_custom_call.1} parent=1 // pred_check_branch
      %34 = sbr.rel (0) target = $region17
    $region16: #{tpu_custom_call.1} parent=1 // pred_region
      %35 = dma.done [#allocation6], 128
    $region17: #{tpu_custom_call.1} parent=1 // pred_fallthru
      _
    %v36 = vld [vmem:[#allocation2] sm:$0xff]
    %v37 = vld [vmem:[#allocation5] sm:$0xff]
    %v38 = vsub.f32 %v36, %v37
    %v39 = vmul.f32 %v38, %v38
    %v40 = vadd.f32 %v39, 0.0
    %41 = vst [vmem:[#allocation7] sm:$0xff] %v40
    // Predicated region
    $region18: #{tpu_custom_call.1} parent=1 // pred_check
      _
    $region19: #{tpu_custom_call.1} parent=1 // pred_check_branch
      %43 = sbr.rel (0) target = $region21
    $region20: #{tpu_custom_call.1} parent=1 // pred_region
      %s45 = ssub.s32 128, 128
      %46 = vsyncadd [#allocation4], %s45
      %s48 = sshll.u32 [#allocation7], 4
      %s49 = int_to_ptr.vmem [resolvable:$true] %s48
      %51 = dma.vmem_to_hbm [thread:$0]  %s49, 128, %s2, [#allocation4]
    $region21: #{tpu_custom_call.1} parent=1 // pred_fallthru
      _
    // Predicated region
    $region22: #{tpu_custom_call.1} parent=1 // pred_check
      _
    $region23: #{tpu_custom_call.1} parent=1 // pred_check_branch
      %53 = sbr.rel (0) target = $region25
    $region24: #{tpu_custom_call.1} parent=1 // pred_region
      %54 = dma.done [#allocation4], 128
    $region25: #{tpu_custom_call.1} parent=1 // pred_fallthru
      _
    %55 = vsyncpa [#allocation3], 1
    %56 = vsyncpa [#allocation6], 1
    %57 = vsyncpa [#allocation4], 1

</llo_original>
